<compile_context>
chip_gen: v5e
topology: v5e:2x2
jax: 0.10.0
libtpu: 0.0.40
codegen_flags: <defaults>
</compile_context>

<pallas_src>
import functools

import jax
import jax.numpy as jnp
from jax.experimental import pallas as pl
from jax.experimental.pallas import tpu as pltpu


def _round_up(x, m):
    return ((x + m - 1) // m) * m


# --------------------------------------------------------------- phase 1: s and f
def s_kernel(h_ref, ct_ref, csq_ref, s_ref, f_ref, *,
             alpha, n_rows, n_clusters, row_tile):
    i = pl.program_id(0)

    @pl.when(i == 0)
    def _():
        f_ref[...] = jnp.zeros_like(f_ref)

    h = h_ref[...]        # (TN, D)  f32
    ct = ct_ref[...]      # (D, Kp)  f32, centers pre-transposed + lane-padded in wrapper
    csq = csq_ref[...]    # (1, Kp)  f32, ||c||^2 (padded lanes are 0)

    # Squared Euclidean distances via the Gram identity; the (TN,D)x(D,Kp) matmul runs
    # on the MXU with a full 128-lane output.
    h_sq = jnp.sum(h * h, axis=-1, keepdims=True)                      # (TN, 1)
    cross = jnp.dot(h, ct, preferred_element_type=jnp.float32)         # (TN, Kp)
    d2 = jnp.maximum(h_sq + csq - 2.0 * cross, 0.0)                    # (TN, Kp)

    # Student-t kernel.  alpha == 1 avoids jnp.power (two transcendentals/elem).
    if alpha == 1.0:
        md = pl.reciprocal(d2 + 1.0, approx=False)
    else:
        md = jnp.power(d2 * (1.0 / alpha) + 1.0, -(alpha + 1.0) / 2.0)

    # Mask padded cluster lanes out of the row normalization.
    kmask = jax.lax.broadcasted_iota(jnp.int32, md.shape, 1) < n_clusters
    md = jnp.where(kmask, md, 0.0)

    denom = jnp.sum(md, axis=-1, keepdims=True)                        # (TN, 1)
    s = md * pl.reciprocal(denom, approx=False)                        # (TN, Kp)
    s_ref[...] = s

    # f = sum over valid rows of s (padded tail rows excluded).
    row = i * row_tile + jax.lax.broadcasted_iota(jnp.int32, (row_tile, 1), 0)
    rmask = row < n_rows
    f_ref[...] += jnp.sum(jnp.where(rmask, s, 0.0), axis=0, keepdims=True)


# --------------------------------------------------------------- phase 2: q and loss
def loss_kernel(s_ref, f_ref, loss_ref, *, n_rows, n_clusters, row_tile):
    i = pl.program_id(0)

    @pl.when(i == 0)
    def _():
        loss_ref[...] = jnp.zeros_like(loss_ref)

    s = s_ref[...]        # (TN, Kp)
    f = f_ref[...]        # (1, Kp)

    kmask = jax.lax.broadcasted_iota(jnp.int32, s.shape, 1) < n_clusters
    row = i * row_tile + jax.lax.broadcasted_iota(jnp.int32, (row_tile, 1), 0)
    rmask = row < n_rows
    valid = jnp.logical_and(kmask, rmask)

    kmask_f = jax.lax.broadcasted_iota(jnp.int32, f.shape, 1) < n_clusters
    f_safe = jnp.where(kmask_f, f, 1.0)                                # avoid 0 in pad lanes

    q_num = (s * s) * pl.reciprocal(f_safe, approx=False)              # (TN, Kp)
    q_den = jnp.sum(q_num, axis=1, keepdims=True)                      # (TN, 1)
    q = q_num * pl.reciprocal(q_den, approx=False)                     # (TN, Kp)

    # KL term: q*(log q - log s) with q = s^2/(f*q_den)
    #   => log q - log s = log s - log f - log q_den   (one full-size log only).
    s_safe = jnp.where(valid, s, 1.0)
    contrib = q * (jnp.log(s_safe) - jnp.log(f_safe) - jnp.log(q_den))
    contrib = jnp.where(valid, contrib, 0.0)

    loss_ref[...] += jnp.sum(contrib, keepdims=True)                   # (1, 1)

    @pl.when(i == pl.num_programs(0) - 1)
    def _():
        loss_ref[...] = loss_ref[...] * (1.0 / n_rows)                 # batchmean


# --------------------------------------------------------------- wrapper
def xie_clusterer_forward(x, h, cluster_centers, alpha=1.0, row_tile=1024):
    """Mirrors XieClusterer.forward: returns {'s': s, 'loss': loss}.  `x` is unused."""
    del x  # forward() ignores x
    n, d = h.shape
    k, d_c = cluster_centers.shape
    assert d == d_c, "feature dims of h and cluster_centers must match"

    h = h.astype(jnp.float32)
    c = cluster_centers.astype(jnp.float32)

    kp = 128 * pl.cdiv(k, 128)                 # lane-dense cluster axis
    tn = min(row_tile, _round_up(n, 8))        # sublane-aligned row tile (sweep 512-2048)
    num_tiles = pl.cdiv(n, tn)
    n_pad = num_tiles * tn

    h_p = jnp.pad(h, ((0, n_pad - n), (0, 0)))                        # (Npad, D)
    ct_p = jnp.pad(c.T, ((0, 0), (0, kp - k)))                        # (D, Kp)
    csq_p = jnp.pad(jnp.sum(c * c, axis=1), (0, kp - k))[None, :]     # (1, Kp)

    cparams = pltpu.CompilerParams(
        dimension_semantics=("arbitrary",),     # f / loss accumulate across row tiles
        vmem_limit_bytes=48 * 1024 * 1024,      # fits v7x's 64 MiB as well as v5e/v6e
    )

    # Phase 1: s tiles + f = sum_n(s)
    s_pad, f = pl.pallas_call(
        functools.partial(s_kernel, alpha=float(alpha), n_rows=n,
                          n_clusters=k, row_tile=tn),
        grid=(num_tiles,),
        in_specs=[
            pl.BlockSpec((tn, d), lambda i: (i, 0)),
            pl.BlockSpec((d, kp), lambda i: (0, 0)),
            pl.BlockSpec((1, kp), lambda i: (0, 0)),
        ],
        out_specs=(
            pl.BlockSpec((tn, kp), lambda i: (i, 0)),
            pl.BlockSpec((1, kp), lambda i: (0, 0)),
        ),
        out_shape=(
            jax.ShapeDtypeStruct((n_pad, kp), jnp.float32),
            jax.ShapeDtypeStruct((1, kp), jnp.float32),
        ),
        compiler_params=cparams,
        cost_estimate=pl.CostEstimate(
            flops=int(2 * n_pad * d * kp + 8 * n_pad * kp),
            transcendentals=int(n_pad * kp + n_pad),
            bytes_accessed=int(4 * (n_pad * d + d * kp + kp + n_pad * kp + kp)),
        ),
    )(h_p, ct_p, csq_p)

    # Phase 2: q + KL loss (needs the completed f, hence a second pass over s)
    loss = pl.pallas_call(
        functools.partial(loss_kernel, n_rows=n, n_clusters=k, row_tile=tn),
        grid=(num_tiles,),
        in_specs=[
            pl.BlockSpec((tn, kp), lambda i: (i, 0)),
            pl.BlockSpec((1, kp), lambda i: (0, 0)),
        ],
        out_specs=pl.BlockSpec((1, 1), lambda i: (0, 0)),
        out_shape=jax.ShapeDtypeStruct((1, 1), jnp.float32),
        compiler_params=cparams,
        cost_estimate=pl.CostEstimate(
            flops=int(10 * n_pad * kp),
            transcendentals=int(n_pad * kp + n_pad + kp),
            bytes_accessed=int(4 * (n_pad * kp + kp + 1)),
        ),
    )(s_pad, f)

    return {"s": s_pad[:n, :k], "loss": loss[0, 0]}


# --------------------------------------------------------------- reference + demo
def _reference(h, c, alpha):
    d2 = jnp.sum((h[:, None, :] - c[None, :, :]) ** 2, axis=-1)
    md = jnp.power(d2 / alpha + 1.0, -(alpha + 1.0) / 2.0)
    s = md / jnp.sum(md, axis=-1, keepdims=True)
    f = jnp.sum(s, axis=0, keepdims=True)
    qn = s ** 2 / f
    q = qn / jnp.sum(qn, axis=1, keepdims=True)
    loss = jnp.sum(q * (jnp.log(q) - jnp.log(s))) / h.shape[0]
    return s, loss


if __name__ == "__main__":
    key = jax.random.PRNGKey(0)
    k_h, k_c, k_x, k_h2, k_c2 = jax.random.split(key, 5)

    # --- small shapes consistent with the module ---
    N, D, K = 8, 32, 4
    x = jax.random.normal(k_x, (2, 4, 16, 16), dtype=jnp.float32)   # unused by forward
    h = jax.random.normal(k_h, (N, D), dtype=jnp.float32)
    cluster_centers = jax.random.normal(k_c, (K, D), dtype=jnp.float32)

    out = xie_clusterer_forward(x, h, cluster_centers, alpha=1.0)
    jax.block_until_ready(out["s"])
    jax.block_until_ready(out["loss"])

    s_ref, loss_ref = _reference(h, cluster_centers, 1.0)
    assert out["s"].shape == (N, K)
    assert jnp.allclose(out["s"], s_ref, atol=1e-5, rtol=1e-5)
    assert jnp.allclose(out["loss"], loss_ref, atol=1e-5, rtol=1e-5)

    # --- exercise the multi-tile / padded path (grid > 1, N not multiple of tile, K != pad) ---
    N2, D2, K2 = 100, 64, 7
    h2 = jax.random.normal(k_h2, (N2, D2), dtype=jnp.float32)
    c2 = jax.random.normal(k_c2, (K2, D2), dtype=jnp.float32)
    out2 = xie_clusterer_forward(None, h2, c2, alpha=1.0, row_tile=32)
    jax.block_until_ready(out2["s"])
    jax.block_until_ready(out2["loss"])

    s_ref2, loss_ref2 = _reference(h2, c2, 1.0)
    assert out2["s"].shape == (N2, K2)
    assert jnp.allclose(out2["s"], s_ref2, atol=1e-5, rtol=1e-5)
    assert jnp.allclose(out2["loss"], loss_ref2, atol=1e-5, rtol=1e-5)

    print("KERNEL_OK")
</pallas_src>

<mosaic_0001>
module attributes {stable_mosaic.version = 11 : i64} {
  func.func @s_kernel(%arg0: i32, %arg1: memref<8x32xf32, #tpu.memory_space<vmem>>, %arg2: memref<32x128xf32, #tpu.memory_space<vmem>>, %arg3: memref<1x128xf32, #tpu.memory_space<vmem>>, %arg4: memref<8x128xf32, #tpu.memory_space<vmem>>, %arg5: memref<1x128xf32, #tpu.memory_space<vmem>>) attributes {dimension_semantics = [#tpu.dimension_semantics<arbitrary>], iteration_bounds = array<i64: 1>, scalar_prefetch = 0 : i64, scratch_operands = 0 : i64, tpu.core_type = #tpu.core_type<tc>, window_params = [{transform_indices = @transform_0, window_bounds = array<i64: 8, 32>}, {pipeline_mode = #tpu.pipeline_mode<synchronous>, transform_indices = @transform_1, window_bounds = array<i64: 32, 128>}, {pipeline_mode = #tpu.pipeline_mode<synchronous>, transform_indices = @transform_2, window_bounds = array<i64: 1, 128>}, {transform_indices = @transform_3, window_bounds = array<i64: 8, 128>}, {pipeline_mode = #tpu.pipeline_mode<synchronous>, transform_indices = @transform_4, window_bounds = array<i64: 1, 128>}]} {
    %c0_i32 = arith.constant 0 : i32
    %0 = arith.cmpi eq, %arg0, %c0_i32 : i32
    %1 = arith.extui %0 : i1 to i32
    %c0_i32_0 = arith.constant 0 : i32
    %2 = arith.cmpi ne, %1, %c0_i32_0 : i32
    scf.if %2 {
      %cst_21 = arith.constant 0.000000e+00 : f32
      %47 = vector.broadcast %cst_21 : f32 to vector<1x128xf32>
      %c0_22 = arith.constant 0 : index
      %c0_23 = arith.constant 0 : index
      %48 = vector.load %arg5[%c0_22, %c0_23] : memref<1x128xf32, #tpu.memory_space<vmem>>, vector<1x128xf32>
      tpu.vector_store %arg5[%c0_22, %c0_23], %47 {strides = array<i32>} : memref<1x128xf32, #tpu.memory_space<vmem>>, vector<1x128xf32>,
    } else {
    }
    %c0 = arith.constant 0 : index
    %c0_1 = arith.constant 0 : index
    %3 = vector.load %arg1[%c0, %c0_1] : memref<8x32xf32, #tpu.memory_space<vmem>>, vector<8x32xf32>
    %c0_2 = arith.constant 0 : index
    %c0_3 = arith.constant 0 : index
    %4 = vector.load %arg2[%c0_2, %c0_3] : memref<32x128xf32, #tpu.memory_space<vmem>>, vector<32x128xf32>
    %c0_4 = arith.constant 0 : index
    %c0_5 = arith.constant 0 : index
    %5 = vector.load %arg3[%c0_4, %c0_5] : memref<1x128xf32, #tpu.memory_space<vmem>>, vector<1x128xf32>
    %6 = arith.mulf %3, %3 : vector<8x32xf32>
    %cst = arith.constant dense<0.000000e+00> : vector<8xf32>
    %7 = vector.multi_reduction <add>, %6, %cst [1] : vector<8x32xf32> to vector<8xf32>
    %8 = vector.shape_cast %7 : vector<8xf32> to vector<8x1xf32>
    %cst_6 = arith.constant dense<0.000000e+00> : vector<8x128xf32>
    %9 = tpu.matmul %3, %4, %cst_6 {dimension_numbers = #tpu.dot_dimension_numbers<[1], [0], [0], [1], [0, 0, 1, 1], [], []>} : vector<8x32xf32>, vector<32x128xf32>, vector<8x128xf32> -> vector<8x128xf32>
    %10 = vector.broadcast %8 : vector<8x1xf32> to vector<8x128xf32>
    %11 = vector.broadcast %5 : vector<1x128xf32> to vector<8x128xf32>
    %12 = arith.addf %10, %11 : vector<8x128xf32>
    %cst_7 = arith.constant 2.000000e+00 : f32
    %13 = vector.broadcast %cst_7 : f32 to vector<8x128xf32>
    %14 = arith.mulf %13, %9 : vector<8x128xf32>
    %15 = arith.subf %12, %14 : vector<8x128xf32>
    %cst_8 = arith.constant 0.000000e+00 : f32
    %16 = vector.broadcast %cst_8 : f32 to vector<8x128xf32>
    %17 = arith.maximumf %15, %16 : vector<8x128xf32>
    %cst_9 = arith.constant 1.000000e+00 : f32
    %18 = vector.broadcast %cst_9 : f32 to vector<8x128xf32>
    %19 = arith.addf %17, %18 : vector<8x128xf32>
    %20 = tpu.reciprocal %19 : vector<8x128xf32> -> vector<8x128xf32>
    %21 = tpu.iota {dimensions = array<i32: 1>} : vector<8x128xi32>
    %c4_i32 = arith.constant 4 : i32
    %22 = vector.broadcast %c4_i32 : i32 to vector<8x128xi32>
    %23 = arith.cmpi slt, %21, %22 : vector<8x128xi32>
    %cst_10 = arith.constant 0.000000e+00 : f32
    %24 = vector.broadcast %cst_10 : f32 to vector<8x128xf32>
    %25 = arith.select %23, %20, %24 : vector<8x128xi1>, vector<8x128xf32>
    %cst_11 = arith.constant dense<0.000000e+00> : vector<8xf32>
    %26 = vector.multi_reduction <add>, %25, %cst_11 [1] : vector<8x128xf32> to vector<8xf32>
    %27 = vector.shape_cast %26 : vector<8xf32> to vector<8x1xf32>
    %28 = tpu.reciprocal %27 : vector<8x1xf32> -> vector<8x1xf32>
    %29 = vector.broadcast %28 : vector<8x1xf32> to vector<8x128xf32>
    %30 = arith.mulf %25, %29 : vector<8x128xf32>
    %c0_12 = arith.constant 0 : index
    %c0_13 = arith.constant 0 : index
    %31 = vector.load %arg4[%c0_12, %c0_13] : memref<8x128xf32, #tpu.memory_space<vmem>>, vector<8x128xf32>
    tpu.vector_store %arg4[%c0_12, %c0_13], %30 {strides = array<i32>} : memref<8x128xf32, #tpu.memory_space<vmem>>, vector<8x128xf32>,
    %c8_i32 = arith.constant 8 : i32
    %32 = arith.muli %arg0, %c8_i32 : i32
    %33 = tpu.iota {dimensions = array<i32: 0>} : vector<8x1xi32>
    %34 = vector.broadcast %32 : i32 to vector<8x1xi32>
    %35 = arith.addi %34, %33 : vector<8x1xi32>
    %c8_i32_14 = arith.constant 8 : i32
    %36 = vector.broadcast %c8_i32_14 : i32 to vector<8x1xi32>
    %37 = arith.cmpi slt, %35, %36 : vector<8x1xi32>
    %c0_15 = arith.constant 0 : index
    %c0_16 = arith.constant 0 : index
    %38 = vector.load %arg5[%c0_15, %c0_16] : memref<1x128xf32, #tpu.memory_space<vmem>>, vector<1x128xf32>
    %cst_17 = arith.constant 0.000000e+00 : f32
    %39 = vector.shape_cast %37 : vector<8x1xi1> to vector<8x1xi1>
    %40 = vector.broadcast %39 : vector<8x1xi1> to vector<8x128xi1>
    %41 = vector.broadcast %cst_17 : f32 to vector<8x128xf32>
    %42 = arith.select %40, %30, %41 : vector<8x128xi1>, vector<8x128xf32>
    %cst_18 = arith.constant dense<0.000000e+00> : vector<128xf32>
    %43 = vector.multi_reduction <add>, %42, %cst_18 [0] : vector<8x128xf32> to vector<128xf32>
    %44 = vector.shape_cast %43 : vector<128xf32> to vector<1x128xf32>
    %45 = arith.addf %38, %44 : vector<1x128xf32>
    %c0_19 = arith.constant 0 : index
    %c0_20 = arith.constant 0 : index
    %46 = vector.load %arg5[%c0_19, %c0_20] : memref<1x128xf32, #tpu.memory_space<vmem>>, vector<1x128xf32>
    tpu.vector_store %arg5[%c0_19, %c0_20], %45 {strides = array<i32>} : memref<1x128xf32, #tpu.memory_space<vmem>>, vector<1x128xf32>,
    return
  }
  func.func @transform_0(%arg0: i32) -> (i32, i32) {
    %c0_i32 = arith.constant 0 : i32
    %c0_i32_0 = arith.constant 0 : i32
    return %arg0, %c0_i32 : i32, i32
  }
  func.func @transform_1(%arg0: i32) -> (i32, i32) {
    %c0_i32 = arith.constant 0 : i32
    %c0_i32_0 = arith.constant 0 : i32
    %c0_i32_1 = arith.constant 0 : i32
    return %c0_i32, %c0_i32_0 : i32, i32
  }
  func.func @transform_2(%arg0: i32) -> (i32, i32) {
    %c0_i32 = arith.constant 0 : i32
    %c0_i32_0 = arith.constant 0 : i32
    %c0_i32_1 = arith.constant 0 : i32
    return %c0_i32, %c0_i32_0 : i32, i32
  }
  func.func @transform_3(%arg0: i32) -> (i32, i32) {
    %c0_i32 = arith.constant 0 : i32
    %c0_i32_0 = arith.constant 0 : i32
    return %arg0, %c0_i32 : i32, i32
  }
  func.func @transform_4(%arg0: i32) -> (i32, i32) {
    %c0_i32 = arith.constant 0 : i32
    %c0_i32_0 = arith.constant 0 : i32
    %c0_i32_1 = arith.constant 0 : i32
    return %c0_i32, %c0_i32_0 : i32, i32
  }
}

</mosaic_0001>

<llo_original>
// kernel: tpu_custom_call.1
$region0: #{tpu_custom_call.1}
  #allocation0 [shape = 'u32[]', space=smem, size = 0x4, offset = 0x4, fixed_abs, tag = 'smem constant byte address 0x4 - core index']
  #allocation1 [shape = 'u32[72,128]{1,0:T(1,128)}', space=vmem, size = 0x9000, scoped, tag = 'internal scratch']
  %s0 = inlined_call_operand.hbm [shape: f32[8,32], index: 0, kind: input, shape index: {}]
  %s1 = inlined_call_operand.hbm [shape: f32[32,128], index: 1, kind: input, shape index: {}]
  %s2 = inlined_call_operand.vmem [shape: f32[1,128], index: 2, kind: input, shape index: {}]
  %s3 = inlined_call_operand.hbm [shape: f32[8,128], index: 3, kind: output, shape index: {0}]
  %s4 = inlined_call_operand.hbm [shape: f32[1,128], index: 4, kind: output, shape index: {1}]
  %5 = xla_tuple %s3, %s4
  %s6 = sld [smem:[#allocation0]]
  $region42: #{tpu_custom_call.1} parent=0
    _
  %s8 = ssub.s32 1, %s6
  %s9 = scalar_select 0, %s8, %s6
  $region1: #{tpu_custom_call.1} parent=0
    #allocation2 [shape = 'u8[4096]{0}', space=vmem, size = 0x1000, scoped, tag = 'input window, operand 0, single buffered']
    #allocation3 [shape = 's32[1]{0}', space=sflag, size = 0x4, scoped, tag = 'scoped memory for tpu_custom_call.1']
    #allocation4 [shape = 's32[1]{0}', space=sflag, size = 0x4, scoped, tag = 'scoped memory for tpu_custom_call.1']
    #allocation5 [shape = 'u8[16384]{0}', space=vmem, size = 0x4000, scoped, tag = 'input window, operand 1, single buffered']
    #allocation6 [shape = 's32[1]{0}', space=sflag, size = 0x4, scoped, tag = 'scoped memory for tpu_custom_call.1']
    #allocation7 [shape = 'u8[4096]{0}', space=vmem, size = 0x1000, scoped, tag = 'output window, operand 0, single buffered']
    #allocation8 [shape = 'u8[512]{0}', space=vmem, size = 0x400, scoped, tag = 'output window, operand 1, single buffered']
    #allocation9 [shape = 's32[1]{0}', space=sflag, size = 0x4, scoped, tag = 'scoped memory for tpu_custom_call.1']
    %10 = vsyncpa [#allocation3], 0
    %11 = vsyncpa [#allocation6], 0
    %12 = vsyncpa [#allocation4], 0
    %13 = vsyncpa [#allocation9], 0
    // Predicated region
    $region2: #{tpu_custom_call.1} parent=1 // pred_check
      _
    $region3: #{tpu_custom_call.1} parent=1 // pred_check_branch
      %15 = sbr.rel (0) target = $region5
    $region4: #{tpu_custom_call.1} parent=1 // pred_region
      %17 = vsyncadd [#allocation3], 0
      %s19 = sshll.u32 %s0, 4
      %s20 = int_to_ptr.hbm [resolvable:$true] %s19
      %s21 = sshll.u32 [#allocation2], 4
      %s22 = int_to_ptr.vmem [resolvable:$true] %s21
      %24 = dma.hbm_to_vmem [thread:$0]  %s20, 128, %s22, [#allocation3]
    $region5: #{tpu_custom_call.1} parent=1 // pred_fallthru
      _
    // Predicated region
    $region6: #{tpu_custom_call.1} parent=1 // pred_check
      _
    $region7: #{tpu_custom_call.1} parent=1 // pred_check_branch
      %26 = sbr.rel (0) target = $region9
    $region8: #{tpu_custom_call.1} parent=1 // pred_region
      %28 = vsyncadd [#allocation6], 0
      %s29 = sshll.u32 %s1, 4
      %s30 = int_to_ptr.hbm [resolvable:$true] %s29
      %s31 = sshll.u32 [#allocation5], 4
      %s32 = int_to_ptr.vmem [resolvable:$true] %s31
      %37 = dma.hbm_to_vmem [thread:$0]  %s30, 512, %s32, [#allocation6], 128, 128, 8
    $region9: #{tpu_custom_call.1} parent=1 // pred_fallthru
      _
    // Predicated region
    $region10: #{tpu_custom_call.1} parent=1 // pred_check
      _
    $region11: #{tpu_custom_call.1} parent=1 // pred_check_branch
      %39 = sbr.rel (0) target = $region13
    $region12: #{tpu_custom_call.1} parent=1 // pred_region
      _
    $region13: #{tpu_custom_call.1} parent=1 // pred_fallthru
      _
    // Predicated region
    $region14: #{tpu_custom_call.1} parent=1 // pred_check
      _
    $region15: #{tpu_custom_call.1} parent=1 // pred_check_branch
      %41 = sbr.rel (0) target = $region17
    $region16: #{tpu_custom_call.1} parent=1 // pred_region
      %43 = dma.done [#allocation3], 128
    $region17: #{tpu_custom_call.1} parent=1 // pred_fallthru
      _
    // Predicated region
    $region18: #{tpu_custom_call.1} parent=1 // pred_check
      _
    $region19: #{tpu_custom_call.1} parent=1 // pred_check_branch
      %45 = sbr.rel (0) target = $region21
    $region20: #{tpu_custom_call.1} parent=1 // pred_region
      %47 = dma.done [#allocation6], 512
    $region21: #{tpu_custom_call.1} parent=1 // pred_fallthru
      _
    %p48 = scmp.eq.s32.totalorder 0, 0
    // Predicated region
    $region22: #{tpu_custom_call.1} parent=1 // pred_check
      %p49 = pneg %p48
    $region23: #{tpu_custom_call.1} parent=1 // pred_check_branch
      %51 = sbr.rel (%p49) target = $region25
    $region24: #{tpu_custom_call.1} parent=1 // pred_region
      %52 = vst [vmem:[#allocation8] sm:$0x1] 0.0
    $region25: #{tpu_custom_call.1} parent=1 // pred_fallthru
      _
    %v53 = vld [vmem:[#allocation2] sm:$0xff]
    %v54 = vld [vmem:[#allocation5] sm:$0xff]
    %v55 = vld [vmem:[#allocation5 + $0x8] sm:$0xff]
    %v56 = vld [vmem:[#allocation5 + $0x10] sm:$0xff]
    %v57 = vld [vmem:[#allocation5 + $0x18] sm:$0xff]
    %v58 = vld [vmem:[%s2] sm:$0x1]
    %v59 = vmul.f32 %v53, %v53
    %vm60 = vcmask 261120
    %v61 = vsel %vm60, %v59, 0.0
    %62 = vadd.xlane.f32.xlu0 %v61
    %v63 = vpop.xlane.xlu0 %62
    %v65 = vsel %vm60, %v53, 0
    %67 = vmatpush.msra.mxu0 0.0
    %68 = vmatpush.msra.mxu0 0.0
    %69 = vmatpush.msra.mxu0 0.0
    %70 = vmatpush.msra.mxu0 0.0
    %71 = vmatpush.msra.mxu0 0.0
    %72 = vmatpush.msra.mxu0 0.0
    %73 = vmatpush.msra.mxu0 0.0
    %74 = vmatpush.msra.mxu0 0.0
    %75 = vmatpush.msra.mxu0 0.0
    %76 = vmatpush.msra.mxu0 0.0
    %77 = vmatpush.msra.mxu0 0.0
    %78 = vmatpush.msra.mxu0 0.0
    %79 = vmatpush.msra.mxu0 %v57
    %80 = vmatpush.msra.mxu0 %v56
    %81 = vmatpush.msra.mxu0 %v55
    %82 = vmatpush.msra.mxu0 %v54
    %83 = vmatmul.f32.gmra.mxu0 %v65
    %v84 = vpop.f32.mrf.mxu0
    %v85 = vadd.f32 0.0, %v84
    %86 = vdwg.mxu0
    %v88 = vperm.slane %v58, 0
    %v90 = vadd.f32 %v63, %v88
    %v91 = vmul.f32 %v85, 2.0
    %v92 = vsub.f32 %v90, %v91
    %v93 = vmax.f32 %v92, 0.0
    %v94 = vadd.f32 %v93, 1.0
    %v95 = vrcp.pop %v94
    %v96 = vmul.f32 %v94, %v95
    %v97 = vsub.f32 1.0, %v96
    %v98 = vmul.f32 %v95, %v97
    %v99 = vadd.f32 %v95, %v98
    %vm100 = vweird.f32 %v94
    %vm101 = vweird.f32 %v95
    %vm102 = vmor %vm100, %vm101
    %v103 = vsel %vm102, %v95, %v99
    %v104 = vand.u32 2147483647, %v94
    %vm105 = vcmp.eq.f32.partialorder %v104, 8.507059e+37
    %v106 = vand.u32 %v94, 2147483648
    %v107 = vor.u32 1.1754944e-38, %v106
    %v108 = vsel %vm105, %v107, %v103
    %v109 = vlaneseq
    %v110 = vand.u32 %v109, 127
    %vm111 = vcmp.lt.s32.totalorder %v110, 4
    %v112 = vsel %vm111, %v108, 0.0
    %113 = vadd.xlane.f32.xlu0 %v112
    %v114 = vpop.xlane.xlu0 %113
    %v115 = vrcp.pop %v114
    %v116 = vmul.f32 %v114, %v115
    %v117 = vsub.f32 1.0, %v116
    %v118 = vmul.f32 %v115, %v117
    %v119 = vadd.f32 %v115, %v118
    %vm120 = vweird.f32 %v114
    %vm121 = vweird.f32 %v115
    %vm122 = vmor %vm120, %vm121
    %v123 = vsel %vm122, %v115, %v119
    %v124 = vand.u32 2147483647, %v114
    %vm125 = vcmp.eq.f32.partialorder %v124, 8.507059e+37
    %v126 = vand.u32 %v114, 2147483648
    %v127 = vor.u32 1.1754944e-38, %v126
    %v128 = vsel %vm125, %v127, %v123
    %v129 = vmul.f32 %v112, %v128
    %130 = vst [vmem:[#allocation7] sm:$0xff] %v129
    %s131 = smul.u32 0, 8
    %v132 = vlaneseq
    %v133 = vshrl.u32 %v132, 7
    %v134 = vstv %s131
    %v135 = vadd.s32 %v134, %v133
    %vm136 = vcmp.lt.s32.totalorder %v135, 8
    %v137 = vld [vmem:[#allocation8] sm:$0x1]
    %v138 = vsel %vm136, 1, 0
    %vm139 = vcmp.eq.s32.totalorder %v138, 1
    %v140 = vsel %vm139, %v129, 0.0
    %v141 = vrot.slane %v140, 4
    %v142 = vadd.f32 %v140, %v141
    %v143 = vrot.slane %v142, 2
    %v144 = vadd.f32 %v142, %v143
    %v145 = vrot.slane %v144, 1
    %v146 = vadd.f32 %v144, %v145
    %v147 = vadd.f32 %v137, %v146
    %148 = vst [vmem:[#allocation8] sm:$0x1] %v147
    // Predicated region
    $region26: #{tpu_custom_call.1} parent=1 // pred_check
      _
    $region27: #{tpu_custom_call.1} parent=1 // pred_check_branch
      %150 = sbr.rel (0) target = $region29
    $region28: #{tpu_custom_call.1} parent=1 // pred_region
      %152 = vsyncadd [#allocation4], 0
      %s154 = sshll.u32 [#allocation7], 4
      %s155 = int_to_ptr.vmem [resolvable:$true] %s154
      %s156 = sshll.u32 %s3, 4
      %s157 = int_to_ptr.hbm [resolvable:$true] %s156
      %159 = dma.vmem_to_hbm [thread:$0]  %s155, 128, %s157, [#allocation4]
    $region29: #{tpu_custom_call.1} parent=1 // pred_fallthru
      _
    // Predicated region
    $region30: #{tpu_custom_call.1} parent=1 // pred_check
      _
    $region31: #{tpu_custom_call.1} parent=1 // pred_check_branch
      %161 = sbr.rel (0) target = $region33
    $region32: #{tpu_custom_call.1} parent=1 // pred_region
      %163 = vsyncadd [#allocation9], 0
      %s165 = sshll.u32 [#allocation8], 4
      %s166 = int_to_ptr.vmem [resolvable:$true] %s165
      %s167 = sshll.u32 %s4, 4
      %s168 = int_to_ptr.hbm [resolvable:$true] %s167
      %170 = dma.vmem_to_hbm [thread:$0]  %s166, 16, %s168, [#allocation9]
    $region33: #{tpu_custom_call.1} parent=1 // pred_fallthru
      _
    // Predicated region
    $region34: #{tpu_custom_call.1} parent=1 // pred_check
      _
    $region35: #{tpu_custom_call.1} parent=1 // pred_check_branch
      %172 = sbr.rel (0) target = $region37
    $region36: #{tpu_custom_call.1} parent=1 // pred_region
      %174 = dma.done [#allocation4], 128
    $region37: #{tpu_custom_call.1} parent=1 // pred_fallthru
      _
    // Predicated region
    $region38: #{tpu_custom_call.1} parent=1 // pred_check
      _
    $region39: #{tpu_custom_call.1} parent=1 // pred_check_branch
      %176 = sbr.rel (0) target = $region41
    $region40: #{tpu_custom_call.1} parent=1 // pred_region
      %178 = dma.done [#allocation9], 16
    $region41: #{tpu_custom_call.1} parent=1 // pred_fallthru
      _
    %179 = vsyncpa [#allocation3], 1
    %180 = vsyncpa [#allocation6], 1
    %181 = vsyncpa [#allocation4], 1
    %182 = vsyncpa [#allocation9], 1

</llo_original>
